<compile_context>
chip_gen: v7x
topology: tpu7x:2x2x1
jax: 0.10.0
libtpu: 0.0.40
codegen_flags: <defaults>
</compile_context>

<pallas_src>
import functools

import jax
import jax.numpy as jnp
from jax.experimental import pallas as pl
from jax.experimental.pallas import tpu as pltpu

BN_EPS = 1e-5


def _mlp_kernel(x_ref, w1_ref, w2_ref, w3_ref, b_ref, w4_ref, b4_ref, o_ref):
    cdt = w1_ref.dtype                    # bf16 (fast path) or f32 (exact path)
    h1 = w1_ref.shape[1]
    h2 = w2_ref.shape[1]

    # Layer 1: Linear(D, 256) + ReLU                 (BN1/Dropout folded forward)
    h = jnp.dot(x_ref[...].astype(cdt), w1_ref[...],
                preferred_element_type=jnp.float32)
    h = jnp.maximum(h + b_ref[:, :h1], 0.0)

    # Layer 2: Linear(256, 128) + ReLU   (BN1 folded in, BN2/Dropout folded fwd)
    h = jnp.dot(h.astype(cdt), w2_ref[...], preferred_element_type=jnp.float32)
    h = jnp.maximum(h + b_ref[:, h1:h1 + h2], 0.0)

    # Layer 3: Linear(128, 64) + ReLU    (BN2 folded in, BN3 folded forward)
    h = jnp.dot(h.astype(cdt), w3_ref[...], preferred_element_type=jnp.float32)
    h = jnp.maximum(h + b_ref[:, h1 + h2:], 0.0)

    # Layer 4: Linear(64, 1) with BN3 folded in.  1-lane MXU matmul would waste
    # the systolic array -> VPU multiply + XLU lane reduction, scalar bias from SMEM.
    out = jnp.sum(h * w4_ref[...], axis=-1, keepdims=True) + b4_ref[0]
    o_ref[...] = out.astype(o_ref.dtype)


def prepare_params(params, *, use_bf16=True):
    """One-time weight prep (call at weight-load time, NOT per inference call).

    Folds eval-mode BatchNorm affines into the following Linear (exact), packs
    the hidden biases into one row, and optionally casts matmul weights to bf16.
    """
    (w1, b1, g1, be1, m1, v1,
     w2, b2, g2, be2, m2, v2,
     w3, b3, g3, be3, m3, v3,
     w4, b4) = params

    def bn_fold(gamma, beta, mean, var):
        scale = gamma * jax.lax.rsqrt(var + BN_EPS)
        shift = beta - mean * scale
        return scale, shift

    s1, t1 = bn_fold(g1, be1, m1, v1)
    s2, t2 = bn_fold(g2, be2, m2, v2)
    s3, t3 = bn_fold(g3, be3, m3, v3)

    # BN_i is an affine applied post-ReLU, right before Linear_{i+1}:
    #   (h*s + t) @ W + b  ==  h @ (s[:,None]*W) + (t @ W + b)   (exact)
    w2f = s1[:, None] * w2
    b2f = b2 + t1 @ w2
    w3f = s2[:, None] * w3
    b3f = b3 + t2 @ w3
    w4f = s3[:, None] * w4                         # (64, 1)
    b4f = (b4 + t3 @ w4).reshape(1)                # (1,) scalar -> SMEM
    w4_row = w4f.reshape(1, -1).astype(jnp.float32)     # (1, 64) row for VPU reduce

    bias_packed = jnp.concatenate([b1, b2f, b3f]).reshape(1, -1).astype(jnp.float32)

    cdt = jnp.bfloat16 if use_bf16 else jnp.float32
    return (w1.astype(cdt), w2f.astype(cdt), w3f.astype(cdt),
            bias_packed, w4_row, b4f.astype(jnp.float32))


@functools.partial(jax.jit, static_argnames=("tile_m",))
def ddg_predictor_forward(x, folded_params, *, tile_m=None):
    """Forward pass of DdGPredictor (eval mode).  x: (N, D) f32 -> (N, 1) f32."""
    n, d = x.shape
    w1, w2, w3, bias, w4_row, b4 = folded_params
    h1, h2, h3 = w1.shape[1], w2.shape[1], w3.shape[1]

    if tile_m is None:
        # 256 fills the 256-wide MXU on v6e/v7x and halves per-step overhead,
        # but only if the grid stays >= 2 (keeps both v7x TensorCores busy).
        # 128 is already a full MXU tile on v5e.
        tile_m = 256 if pl.cdiv(n, 256) >= 2 else 128

    full = lambda shape: pl.BlockSpec(shape, lambda i: (0, 0))

    grid_spec = pltpu.PrefetchScalarGridSpec(
        num_scalar_prefetch=0,
        grid=(pl.cdiv(n, tile_m),),               # ragged last block if n % tile_m
        in_specs=[
            pl.BlockSpec((tile_m, d), lambda i: (i, 0)),   # x tile (streamed)
            full((d, h1)),                                  # W1
            full((h1, h2)),                                 # W2' (BN1 folded)
            full((h2, h3)),                                 # W3' (BN2 folded)
            full((1, h1 + h2 + h3)),                        # packed biases
            full((1, h3)),                                  # w4 row (BN3 folded)
            pl.BlockSpec(memory_space=pltpu.MemorySpace.SMEM),   # b4 scalar
        ],
        out_specs=pl.BlockSpec((tile_m, 1), lambda i: (i, 0)),
    )

    return pl.pallas_call(
        _mlp_kernel,
        out_shape=jax.ShapeDtypeStruct((n, 1), jnp.float32),
        grid_spec=grid_spec,
        compiler_params=pltpu.CompilerParams(
            dimension_semantics=("parallel",)),
    )(x, w1, w2, w3, bias, w4_row, b4)


def init_params(key, input_dim):
    """Deterministic synthetic parameters matching DdGPredictor.__init__ shapes."""
    dims = [(input_dim, 256), (256, 128), (128, 64), (64, 1)]
    keys = jax.random.split(key, 16)
    k = iter(keys)

    def linear(kw, kb, din, dout):
        bound = 1.0 / jnp.sqrt(din)
        w = jax.random.uniform(kw, (din, dout), jnp.float32, -bound, bound)
        b = jax.random.uniform(kb, (dout,), jnp.float32, -bound, bound)
        return w, b

    def batchnorm(km, kv, c):
        gamma = jnp.ones((c,), jnp.float32)
        beta = jnp.zeros((c,), jnp.float32)
        mean = 0.1 * jax.random.normal(km, (c,), jnp.float32)
        var = 1.0 + 0.1 * jax.random.uniform(kv, (c,), jnp.float32)
        return gamma, beta, mean, var

    w1, b1 = linear(next(k), next(k), *dims[0])
    g1, be1, m1, v1 = batchnorm(next(k), next(k), dims[0][1])
    w2, b2 = linear(next(k), next(k), *dims[1])
    g2, be2, m2, v2 = batchnorm(next(k), next(k), dims[1][1])
    w3, b3 = linear(next(k), next(k), *dims[2])
    g3, be3, m3, v3 = batchnorm(next(k), next(k), dims[2][1])
    w4, b4 = linear(next(k), next(k), *dims[3])

    return (w1, b1, g1, be1, m1, v1,
            w2, b2, g2, be2, m2, v2,
            w3, b3, g3, be3, m3, v3,
            w4, b4)


def reference_forward(x, params):
    """Pure-JAX reference (eval-mode PyTorch semantics) for validation."""
    (w1, b1, g1, be1, m1, v1,
     w2, b2, g2, be2, m2, v2,
     w3, b3, g3, be3, m3, v3,
     w4, b4) = params

    def bn(h, g, be, m, v):
        return g * (h - m) * jax.lax.rsqrt(v + BN_EPS) + be

    h = jnp.maximum(x @ w1 + b1, 0.0)
    h = bn(h, g1, be1, m1, v1)
    h = jnp.maximum(h @ w2 + b2, 0.0)
    h = bn(h, g2, be2, m2, v2)
    h = jnp.maximum(h @ w3 + b3, 0.0)
    h = bn(h, g3, be3, m3, v3)
    return h @ w4 + b4
    # TODO(synk): train-mode Dropout / BatchNorm batch-stat updates are not
    # implemented (eval-mode forward only, matching module.eval() semantics).


if __name__ == "__main__":
    key = jax.random.PRNGKey(0)
    k_x1, k_x2, k_p = jax.random.split(key, 3)

    INPUT_DIM = 32
    params = init_params(k_p, INPUT_DIM)

    # --- Exact f32 path, non-tile-multiple batch (exercises ragged last block) ---
    N1 = 200
    x1 = jax.random.normal(k_x1, (N1, INPUT_DIM), jnp.float32)
    folded_f32 = prepare_params(params, use_bf16=False)
    y1 = jax.block_until_ready(ddg_predictor_forward(x1, folded_f32))
    ref1 = reference_forward(x1, params)
    assert y1.shape == (N1, 1)
    err1 = float(jnp.max(jnp.abs(y1 - ref1)))
    assert err1 < 1e-3, f"f32 path mismatch vs. pure-JAX reference: {err1}"

    # --- bf16 MXU path, tile-aligned batch of 256 (grid of 2 parallel tiles) ---
    N2 = 256
    x2 = jax.random.normal(k_x2, (N2, INPUT_DIM), jnp.float32)
    folded_bf16 = prepare_params(params, use_bf16=True)
    y2 = jax.block_until_ready(ddg_predictor_forward(x2, folded_bf16))
    ref2 = reference_forward(x2, params)
    assert y2.shape == (N2, 1)
    err2 = float(jnp.max(jnp.abs(y2 - ref2)))
    assert err2 < 2e-2, f"bf16 path mismatch vs. pure-JAX reference: {err2}"

    print("KERNEL_OK")
</pallas_src>

<mosaic_0001>
module attributes {stable_mosaic.version = 11 : i64} {
  func.func @_mlp_kernel(%arg0: i32, %arg1: memref<128x32xf32, #tpu.memory_space<vmem>>, %arg2: memref<32x256xf32, #tpu.memory_space<vmem>>, %arg3: memref<256x128xf32, #tpu.memory_space<vmem>>, %arg4: memref<128x64xf32, #tpu.memory_space<vmem>>, %arg5: memref<1x448xf32, #tpu.memory_space<vmem>>, %arg6: memref<1x64xf32, #tpu.memory_space<vmem>>, %arg7: memref<1xf32, #tpu.memory_space<smem>>, %arg8: memref<128x1xf32, #tpu.memory_space<vmem>>) attributes {dimension_semantics = [#tpu.dimension_semantics<parallel>], iteration_bounds = array<i64: 2>, scalar_prefetch = 0 : i64, scratch_operands = 0 : i64, tpu.core_type = #tpu.core_type<tc>, window_params = [{transform_indices = @transform_0, window_bounds = array<i64: 128, 32>}, {pipeline_mode = #tpu.pipeline_mode<synchronous>, transform_indices = @transform_1, window_bounds = array<i64: 32, 256>}, {pipeline_mode = #tpu.pipeline_mode<synchronous>, transform_indices = @transform_2, window_bounds = array<i64: 256, 128>}, {pipeline_mode = #tpu.pipeline_mode<synchronous>, transform_indices = @transform_3, window_bounds = array<i64: 128, 64>}, {pipeline_mode = #tpu.pipeline_mode<synchronous>, transform_indices = @transform_4, window_bounds = array<i64: 1, 448>}, {pipeline_mode = #tpu.pipeline_mode<synchronous>, transform_indices = @transform_5, window_bounds = array<i64: 1, 64>}, {transform_indices = @transform_6, window_bounds = array<i64: 1>}, {transform_indices = @transform_7, window_bounds = array<i64: 128, 1>}]} {
    %c0 = arith.constant 0 : index
    %c0_0 = arith.constant 0 : index
    %0 = vector.load %arg1[%c0, %c0_0] : memref<128x32xf32, #tpu.memory_space<vmem>>, vector<128x32xf32>
    %c0_1 = arith.constant 0 : index
    %c0_2 = arith.constant 0 : index
    %1 = vector.load %arg2[%c0_1, %c0_2] : memref<32x256xf32, #tpu.memory_space<vmem>>, vector<32x256xf32>
    %cst = arith.constant dense<0.000000e+00> : vector<128x256xf32>
    %2 = tpu.matmul %0, %1, %cst {dimension_numbers = #tpu.dot_dimension_numbers<[1], [0], [0], [1], [0, 0, 1, 1], [], []>} : vector<128x32xf32>, vector<32x256xf32>, vector<128x256xf32> -> vector<128x256xf32>
    %c0_3 = arith.constant 0 : index
    %c0_4 = arith.constant 0 : index
    %3 = vector.load %arg5[%c0_3, %c0_4] : memref<1x448xf32, #tpu.memory_space<vmem>>, vector<1x256xf32>
    %4 = vector.broadcast %3 : vector<1x256xf32> to vector<128x256xf32>
    %5 = arith.addf %2, %4 : vector<128x256xf32>
    %cst_5 = arith.constant 0.000000e+00 : f32
    %6 = vector.broadcast %cst_5 : f32 to vector<128x256xf32>
    %7 = arith.maximumf %5, %6 : vector<128x256xf32>
    %c0_6 = arith.constant 0 : index
    %c0_7 = arith.constant 0 : index
    %8 = vector.load %arg3[%c0_6, %c0_7] : memref<256x128xf32, #tpu.memory_space<vmem>>, vector<256x128xf32>
    %cst_8 = arith.constant dense<0.000000e+00> : vector<128x128xf32>
    %9 = tpu.matmul %7, %8, %cst_8 {dimension_numbers = #tpu.dot_dimension_numbers<[1], [0], [0], [1], [0, 0, 1, 1], [], []>} : vector<128x256xf32>, vector<256x128xf32>, vector<128x128xf32> -> vector<128x128xf32>
    %c0_9 = arith.constant 0 : index
    %c256 = arith.constant 256 : index
    %10 = vector.load %arg5[%c0_9, %c256] : memref<1x448xf32, #tpu.memory_space<vmem>>, vector<1x128xf32>
    %11 = vector.broadcast %10 : vector<1x128xf32> to vector<128x128xf32>
    %12 = arith.addf %9, %11 : vector<128x128xf32>
    %cst_10 = arith.constant 0.000000e+00 : f32
    %13 = vector.broadcast %cst_10 : f32 to vector<128x128xf32>
    %14 = arith.maximumf %12, %13 : vector<128x128xf32>
    %c0_11 = arith.constant 0 : index
    %c0_12 = arith.constant 0 : index
    %15 = vector.load %arg4[%c0_11, %c0_12] : memref<128x64xf32, #tpu.memory_space<vmem>>, vector<128x64xf32>
    %cst_13 = arith.constant dense<0.000000e+00> : vector<128x64xf32>
    %16 = tpu.matmul %14, %15, %cst_13 {dimension_numbers = #tpu.dot_dimension_numbers<[1], [0], [0], [1], [0, 0, 1, 1], [], []>} : vector<128x128xf32>, vector<128x64xf32>, vector<128x64xf32> -> vector<128x64xf32>
    %c0_14 = arith.constant 0 : index
    %c384 = arith.constant 384 : index
    %17 = vector.load %arg5[%c0_14, %c384] : memref<1x448xf32, #tpu.memory_space<vmem>>, vector<1x64xf32>
    %18 = vector.broadcast %17 : vector<1x64xf32> to vector<128x64xf32>
    %19 = arith.addf %16, %18 : vector<128x64xf32>
    %cst_15 = arith.constant 0.000000e+00 : f32
    %20 = vector.broadcast %cst_15 : f32 to vector<128x64xf32>
    %21 = arith.maximumf %19, %20 : vector<128x64xf32>
    %c0_16 = arith.constant 0 : index
    %c0_17 = arith.constant 0 : index
    %22 = vector.load %arg6[%c0_16, %c0_17] : memref<1x64xf32, #tpu.memory_space<vmem>>, vector<1x64xf32>
    %23 = vector.broadcast %22 : vector<1x64xf32> to vector<128x64xf32>
    %24 = arith.mulf %21, %23 : vector<128x64xf32>
    %cst_18 = arith.constant dense<0.000000e+00> : vector<128xf32>
    %25 = vector.multi_reduction <add>, %24, %cst_18 [1] : vector<128x64xf32> to vector<128xf32>
    %26 = vector.shape_cast %25 : vector<128xf32> to vector<128x1xf32>
    %c0_19 = arith.constant 0 : index
    %27 = memref.load %arg7[%c0_19] : memref<1xf32, #tpu.memory_space<smem>>
    %28 = vector.broadcast %27 : f32 to vector<128x1xf32>
    %29 = arith.addf %26, %28 : vector<128x1xf32>
    %c0_20 = arith.constant 0 : index
    %c0_21 = arith.constant 0 : index
    %30 = vector.load %arg8[%c0_20, %c0_21] : memref<128x1xf32, #tpu.memory_space<vmem>>, vector<128x1xf32>
    tpu.vector_store %arg8[%c0_20, %c0_21], %29 {strides = array<i32>} : memref<128x1xf32, #tpu.memory_space<vmem>>, vector<128x1xf32>,
    return
  }
  func.func @transform_0(%arg0: i32) -> (i32, i32) {
    %c0_i32 = arith.constant 0 : i32
    %c0_i32_0 = arith.constant 0 : i32
    return %arg0, %c0_i32 : i32, i32
  }
  func.func @transform_1(%arg0: i32) -> (i32, i32) {
    %c0_i32 = arith.constant 0 : i32
    %c0_i32_0 = arith.constant 0 : i32
    %c0_i32_1 = arith.constant 0 : i32
    return %c0_i32, %c0_i32_0 : i32, i32
  }
  func.func @transform_2(%arg0: i32) -> (i32, i32) {
    %c0_i32 = arith.constant 0 : i32
    %c0_i32_0 = arith.constant 0 : i32
    %c0_i32_1 = arith.constant 0 : i32
    return %c0_i32, %c0_i32_0 : i32, i32
  }
  func.func @transform_3(%arg0: i32) -> (i32, i32) {
    %c0_i32 = arith.constant 0 : i32
    %c0_i32_0 = arith.constant 0 : i32
    %c0_i32_1 = arith.constant 0 : i32
    return %c0_i32, %c0_i32_0 : i32, i32
  }
  func.func @transform_4(%arg0: i32) -> (i32, i32) {
    %c0_i32 = arith.constant 0 : i32
    %c0_i32_0 = arith.constant 0 : i32
    %c0_i32_1 = arith.constant 0 : i32
    return %c0_i32, %c0_i32_0 : i32, i32
  }
  func.func @transform_5(%arg0: i32) -> (i32, i32) {
    %c0_i32 = arith.constant 0 : i32
    %c0_i32_0 = arith.constant 0 : i32
    %c0_i32_1 = arith.constant 0 : i32
    return %c0_i32, %c0_i32_0 : i32, i32
  }
  func.func @transform_6(%arg0: i32) -> i32 {
    %c0_i32 = arith.constant 0 : i32
    %c0_i32_0 = arith.constant 0 : i32
    return %c0_i32 : i32
  }
  func.func @transform_7(%arg0: i32) -> (i32, i32) {
    %c0_i32 = arith.constant 0 : i32
    %c0_i32_0 = arith.constant 0 : i32
    return %arg0, %c0_i32 : i32, i32
  }
}

</mosaic_0001>

<llo_original>
// kernel: ddg_predictor_forward.1
$region0: #{ddg_predictor_forward.1}
  #allocation0 [shape = 'u32[]', space=smem, size = 0x4, offset = 0x4, fixed_abs, tag = 'smem constant byte address 0x4 - core index']
  #allocation1 [shape = 'u32[144,128]{1,0:T(1,128)}', space=vmem, size = 0x12000, scoped, tag = 'internal scratch']
  #allocation2 [shape = 'f32[1]{0:T(128)S(6)}', space=smem, size = 0x200, scoped, tag = 'scoped memory for ddg_predictor_forward.1']
  %s0 = inlined_call_operand.vmem [shape: f32[200,32], index: 0, kind: input, shape index: {}]
  %s1 = inlined_call_operand.vmem [shape: f32[32,256], index: 1, kind: input, shape index: {}]
  %s2 = inlined_call_operand.vmem [shape: f32[256,128], index: 2, kind: input, shape index: {}]
  %s3 = inlined_call_operand.vmem [shape: f32[128,64], index: 3, kind: input, shape index: {}]
  %s4 = inlined_call_operand.vmem [shape: f32[1,448], index: 4, kind: input, shape index: {}]
  %s5 = inlined_call_operand.vmem [shape: f32[1,64], index: 5, kind: input, shape index: {}]
  %s6 = inlined_call_operand.<no memory space> [shape: f32[1], index: 6, kind: input, shape index: {}]
  %s7 = inlined_call_operand.vmem [shape: f32[200,1], index: 7, kind: output, shape index: {}]
  %s8 = sld [smem:[#allocation0]]
  $region109: #{ddg_predictor_forward.1} parent=0
    _
  %s10 = ssub.s32 1, %s8
  %s11 = scalar_select 0, %s10, %s8
  %12 = sst [smem:[#allocation2]] %s6
  $region1: #{ddg_predictor_forward.1} parent=0
    #allocation3 [shape = 'u8[131072]{0}', space=vmem, size = 0x20000, scoped, tag = 'output window, operand 0']
    loop: start=0, step=1, limit=4
    $region2: #{ddg_predictor_forward.1} parent=1 // loop_pre_header
      _
    $region3: #{ddg_predictor_forward.1} parent=1 // loop_header
      %s14 = sphi 0, %s18
      %p15 = scmp.ge.s32.totalorder %s14, 4
      %s24 = sphi 0, %s26
      %s27 = sphi 0, %s24
      %s28 = sphi 0, %s27
      %s44 = sphi 0, %s28
      %s48 = sphi 0, %s48
      %s50 = sphi 0, %s48
      %s51 = sphi 0, %s50
      %s65 = sphi 0, %s51
      %s69 = sphi 0, %s69
      %s71 = sphi 0, %s69
      %s72 = sphi 0, %s71
      %s86 = sphi 0, %s72
      %s90 = sphi 0, %s90
      %s92 = sphi 0, %s90
      %s93 = sphi 0, %s92
      %s107 = sphi 0, %s93
      %s111 = sphi 0, %s111
      %s113 = sphi 0, %s111
      %s114 = sphi 0, %s113
      %s128 = sphi 0, %s114
      %s132 = sphi 0, %s132
      %s134 = sphi 0, %s132
      %s135 = sphi 0, %s134
      %s149 = sphi 0, %s135
      %s153 = sphi 0, %s153
      %s155 = sphi 0, %s153
      %s156 = sphi 0, %s155
      %s170 = sphi 0, %s156
      %s176 = sphi 0, %s178
      %s179 = sphi 0, %s176
      %s180 = sphi 0, %s179
      %s196 = sphi 0, %s180
    $region4: #{ddg_predictor_forward.1} parent=1 // loop_header_branch
      %17 = sbr.rel (%p15) target = $region8
    $region5: #{ddg_predictor_forward.1} parent=1 // loop_body
      %s19 = ssub.s32 %s14, 1
      %s20 = ssub.s32 %s14, 2
      %s21 = sadd.s32 %s14, 1
      %s22 = ssub.s32 %s14, %s21
      %p23 = scmp.eq.s32.totalorder %s22, 0
      %s25 = sadd.s32 %s24, 1
      %s26 = scalar_select %p23, %s24, %s25
      %p29 = pneg %p23
      %p30 = scmp.eq.s32.totalorder %s14, 1
      %p31 = por %p29, %p30
      %p32 = scmp.ne.s32.totalorder %s24, %s27
      %p33 = scmp.eq.s32.totalorder %s14, 0
      %p34 = por %p32, %p33
      %p35 = scmp.ne.s32.totalorder %s24, %s27
      %p36 = scmp.eq.s32.totalorder %s19, 1
      %p37 = por %p35, %p36
      %p38 = scmp.ne.s32.totalorder %s27, %s28
      %p39 = scmp.eq.s32.totalorder %s19, 0
      %p40 = por %p38, %p39
      %p41 = scmp.ne.s32.totalorder %s27, %s28
      %p42 = scmp.eq.s32.totalorder %s20, 1
      %p43 = por %p41, %p42
      %p45 = scmp.ne.s32.totalorder %s28, %s44
      %p46 = scmp.eq.s32.totalorder %s20, 0
      %p47 = por %p45, %p46
      %s49 = sadd.s32 %s48, 1
      %p52 = scmp.eq.s32.totalorder %s14, 1
      %p53 = scmp.ne.s32.totalorder %s48, %s50
      %p54 = scmp.eq.s32.totalorder %s14, 0
      %p55 = por %p53, %p54
      %p56 = scmp.ne.s32.totalorder %s48, %s50
      %p57 = scmp.eq.s32.totalorder %s19, 1
      %p58 = por %p56, %p57
      %p59 = scmp.ne.s32.totalorder %s50, %s51
      %p60 = scmp.eq.s32.totalorder %s19, 0
      %p61 = por %p59, %p60
      %p62 = scmp.ne.s32.totalorder %s50, %s51
      %p63 = scmp.eq.s32.totalorder %s20, 1
      %p64 = por %p62, %p63
      %p66 = scmp.ne.s32.totalorder %s51, %s65
      %p67 = scmp.eq.s32.totalorder %s20, 0
      %p68 = por %p66, %p67
      %s70 = sadd.s32 %s69, 1
      %p73 = scmp.eq.s32.totalorder %s14, 1
      %p74 = scmp.ne.s32.totalorder %s69, %s71
      %p75 = scmp.eq.s32.totalorder %s14, 0
      %p76 = por %p74, %p75
      %p77 = scmp.ne.s32.totalorder %s69, %s71
      %p78 = scmp.eq.s32.totalorder %s19, 1
      %p79 = por %p77, %p78
      %p80 = scmp.ne.s32.totalorder %s71, %s72
      %p81 = scmp.eq.s32.totalorder %s19, 0
      %p82 = por %p80, %p81
      %p83 = scmp.ne.s32.totalorder %s71, %s72
      %p84 = scmp.eq.s32.totalorder %s20, 1
      %p85 = por %p83, %p84
      %p87 = scmp.ne.s32.totalorder %s72, %s86
      %p88 = scmp.eq.s32.totalorder %s20, 0
      %p89 = por %p87, %p88
      %s91 = sadd.s32 %s90, 1
      %p94 = scmp.eq.s32.totalorder %s14, 1
      %p95 = scmp.ne.s32.totalorder %s90, %s92
      %p96 = scmp.eq.s32.totalorder %s14, 0
      %p97 = por %p95, %p96
      %p98 = scmp.ne.s32.totalorder %s90, %s92
      %p99 = scmp.eq.s32.totalorder %s19, 1
      %p100 = por %p98, %p99
      %p101 = scmp.ne.s32.totalorder %s92, %s93
      %p102 = scmp.eq.s32.totalorder %s19, 0
      %p103 = por %p101, %p102
      %p104 = scmp.ne.s32.totalorder %s92, %s93
      %p105 = scmp.eq.s32.totalorder %s20, 1
      %p106 = por %p104, %p105
      %p108 = scmp.ne.s32.totalorder %s93, %s107
      %p109 = scmp.eq.s32.totalorder %s20, 0
      %p110 = por %p108, %p109
      %s112 = sadd.s32 %s111, 1
      %p115 = scmp.eq.s32.totalorder %s14, 1
      %p116 = scmp.ne.s32.totalorder %s111, %s113
      %p117 = scmp.eq.s32.totalorder %s14, 0
      %p118 = por %p116, %p117
      %p119 = scmp.ne.s32.totalorder %s111, %s113
      %p120 = scmp.eq.s32.totalorder %s19, 1
      %p121 = por %p119, %p120
      %p122 = scmp.ne.s32.totalorder %s113, %s114
      %p123 = scmp.eq.s32.totalorder %s19, 0
      %p124 = por %p122, %p123
      %p125 = scmp.ne.s32.totalorder %s113, %s114
      %p126 = scmp.eq.s32.totalorder %s20, 1
      %p127 = por %p125, %p126
      %p129 = scmp.ne.s32.totalorder %s114, %s128
      %p130 = scmp.eq.s32.totalorder %s20, 0
      %p131 = por %p129, %p130
      %s133 = sadd.s32 %s132, 1
      %p136 = scmp.eq.s32.totalorder %s14, 1
      %p137 = scmp.ne.s32.totalorder %s132, %s134
      %p138 = scmp.eq.s32.totalorder %s14, 0
      %p139 = por %p137, %p138
      %p140 = scmp.ne.s32.totalorder %s132, %s134
      %p141 = scmp.eq.s32.totalorder %s19, 1
      %p142 = por %p140, %p141
      %p143 = scmp.ne.s32.totalorder %s134, %s135
      %p144 = scmp.eq.s32.totalorder %s19, 0
      %p145 = por %p143, %p144
      %p146 = scmp.ne.s32.totalorder %s134, %s135
      %p147 = scmp.eq.s32.totalorder %s20, 1
      %p148 = por %p146, %p147
      %p150 = scmp.ne.s32.totalorder %s135, %s149
      %p151 = scmp.eq.s32.totalorder %s20, 0
      %p152 = por %p150, %p151
      %s154 = sadd.s32 %s153, 1
      %p157 = scmp.eq.s32.totalorder %s14, 1
      %p158 = scmp.ne.s32.totalorder %s153, %s155
      %p159 = scmp.eq.s32.totalorder %s14, 0
      %p160 = por %p158, %p159
      %p161 = scmp.ne.s32.totalorder %s153, %s155
      %p162 = scmp.eq.s32.totalorder %s19, 1
      %p163 = por %p161, %p162
      %p164 = scmp.ne.s32.totalorder %s155, %s156
      %p165 = scmp.eq.s32.totalorder %s19, 0
      %p166 = por %p164, %p165
      %p167 = scmp.ne.s32.totalorder %s155, %s156
      %p168 = scmp.eq.s32.totalorder %s20, 1
      %p169 = por %p167, %p168
      %p171 = scmp.ne.s32.totalorder %s156, %s170
      %p172 = scmp.eq.s32.totalorder %s20, 0
      %p173 = por %p171, %p172
      %s174 = ssub.s32 %s14, %s21
      %p175 = scmp.eq.s32.totalorder %s174, 0
      %s177 = sadd.s32 %s176, 1
      %s178 = scalar_select %p175, %s176, %s177
      %p181 = pneg %p175
      %p182 = scmp.eq.s32.totalorder %s14, 1
      %p183 = por %p181, %p182
      %p184 = scmp.ne.s32.totalorder %s176, %s179
      %p185 = scmp.eq.s32.totalorder %s14, 0
      %p186 = por %p184, %p185
      %p187 = scmp.ne.s32.totalorder %s176, %s179
      %p188 = scmp.eq.s32.totalorder %s19, 1
      %p189 = por %p187, %p188
      %p190 = scmp.ne.s32.totalorder %s179, %s180
      %p191 = scmp.eq.s32.totalorder %s19, 0
      %p192 = por %p190, %p191
      %p193 = scmp.ne.s32.totalorder %s179, %s180
      %p194 = scmp.eq.s32.totalorder %s20, 1
      %p195 = por %p193, %p194
      %p197 = scmp.ne.s32.totalorder %s180, %s196
      %p198 = scmp.eq.s32.totalorder %s20, 0
      %p199 = por %p197, %p198
      %p200 = scmp.le.s32.totalorder 1, %s14
      %p201 = scmp.lt.s32.totalorder %s14, 3
      %p202 = pnand %p200, %p201
      %p203 = pneg %p202
      // Predicated region
      $region9: #{ddg_predictor_forward.1} parent=5 // pred_check
        _
      $region10: #{ddg_predictor_forward.1} parent=5 // pred_check_branch
        %205 = sbr.rel (%p202) target = $region12
      $region11: #{ddg_predictor_forward.1} parent=5 // pred_region
        %s206 = ssub.s32 %s14, 1
        // Predicated region
        $region13: #{ddg_predictor_forward.1} parent=11 // pred_check
          %p207 = pneg %p61
        $region14: #{ddg_predictor_forward.1} parent=11 // pred_check_branch
          %209 = sbr.rel (%p207) target = $region16
        $region15: #{ddg_predictor_forward.1} parent=11 // pred_region
          _
        $region16: #{ddg_predictor_forward.1} parent=11 // pred_fallthru
          _
        // Predicated region
        $region17: #{ddg_predictor_forward.1} parent=11 // pred_check
          %p210 = pneg %p82
        $region18: #{ddg_predictor_forward.1} parent=11 // pred_check_branch
          %212 = sbr.rel (%p210) target = $region20
        $region19: #{ddg_predictor_forward.1} parent=11 // pred_region
          _
        $region20: #{ddg_predictor_forward.1} parent=11 // pred_fallthru
          _
        // Predicated region
        $region21: #{ddg_predictor_forward.1} parent=11 // pred_check
          %p213 = pneg %p103
        $region22: #{ddg_predictor_forward.1} parent=11 // pred_check_branch
          %215 = sbr.rel (%p213) target = $region24
        $region23: #{ddg_predictor_forward.1} parent=11 // pred_region
          _
        $region24: #{ddg_predictor_forward.1} parent=11 // pred_fallthru
          _
        // Predicated region
        $region25: #{ddg_predictor_forward.1} parent=11 // pred_check
          %p216 = pneg %p124
        $region26: #{ddg_predictor_forward.1} parent=11 // pred_check_branch
          %218 = sbr.rel (%p216) target = $region28
        $region27: #{ddg_predictor_forward.1} parent=11 // pred_region
          _
        $region28: #{ddg_predictor_forward.1} parent=11 // pred_fallthru
          _
        // Predicated region
        $region29: #{ddg_predictor_forward.1} parent=11 // pred_check
          %p219 = pneg %p145
        $region30: #{ddg_predictor_forward.1} parent=11 // pred_check_branch
          %221 = sbr.rel (%p219) target = $region32
        $region31: #{ddg_predictor_forward.1} parent=11 // pred_region
          _
        $region32: #{ddg_predictor_forward.1} parent=11 // pred_fallthru
          _
        // Predicated region
        $region33: #{ddg_predictor_forward.1} parent=11 // pred_check
          %p222 = pneg %p166
        $region34: #{ddg_predictor_forward.1} parent=11 // pred_check_branch
          %224 = sbr.rel (%p222) target = $region36
        $region35: #{ddg_predictor_forward.1} parent=11 // pred_region
          _
        $region36: #{ddg_predictor_forward.1} parent=11 // pred_fallthru
          _
      $region12: #{ddg_predictor_forward.1} parent=5 // pred_fallthru
        _
      %p225 = scmp.lt.s32.totalorder %s14, 2
      // Predicated region
      $region37: #{ddg_predictor_forward.1} parent=5 // pred_check
        %p226 = pneg %p225
      $region38: #{ddg_predictor_forward.1} parent=5 // pred_check_branch
        %228 = sbr.rel (%p226) target = $region40
      $region39: #{ddg_predictor_forward.1} parent=5 // pred_region
        // Predicated region
        $region41: #{ddg_predictor_forward.1} parent=39 // pred_check
          %p229 = pneg %p34
        $region42: #{ddg_predictor_forward.1} parent=39 // pred_check_branch
          %231 = sbr.rel (%p229) target = $region44
        $region43: #{ddg_predictor_forward.1} parent=39 // pred_region
          %s232 = smul.u32 16, %s14
          %s233 = ssub.s32 25, %s232
          %p234 = scmp.lt.s32.totalorder %s233, 16
          %s235 = scalar_select %p234, %s233, 16
          %s236 = smul.u32 128, %s235
          %p237 = scmp.lt.s32.totalorder %s232, 24
          %s238 = scalar_select %p237, %s232, 24
          %s239 = smul.addr %s238, 8
          %s240 = scalar_lea.vmem %s0, %s239
          %s241 = smul.u32 16, %s14
          %s242 = ssub.s32 25, %s241
          %p243 = scmp.lt.s32.totalorder %s242, 16
          %s244 = scalar_select %p243, %s242, 16
          %s245 = smul.u32 128, %s244
        $region44: #{ddg_predictor_forward.1} parent=39 // pred_fallthru
          _
      $region40: #{ddg_predictor_forward.1} parent=5 // pred_fallthru
        _
      %p246 = scmp.le.s32.totalorder 1, %s14
      %p247 = scmp.lt.s32.totalorder %s14, 3
      %p248 = pnand %p246, %p247
      %p249 = pneg %p248
      // Predicated region
      $region45: #{ddg_predictor_forward.1} parent=5 // pred_check
        _
      $region46: #{ddg_predictor_forward.1} parent=5 // pred_check_branch
        %251 = sbr.rel (%p248) target = $region48
      $region47: #{ddg_predictor_forward.1} parent=5 // pred_region
        %s252 = ssub.s32 %s14, 1
        %s253 = smul.u32 16, %s19
        %s254 = ssub.s32 25, %s253
        %p255 = scmp.lt.s32.totalorder %s254, 16
        %s256 = scalar_select %p255, %s254, 16
        %s257 = smul.u32 128, %s256
        %p258 = scmp.lt.s32.totalorder %s253, 24
        %s259 = scalar_select %p258, %s253, 24
        %s260 = smul.addr %s259, 8
        %s261 = scalar_lea.vmem %s0, %s260
        %p262 = pneg %p40
        %p263 = pneg %p37
        %p264 = pneg %p61
        %p265 = pneg %p58
        %p266 = pneg %p82
        %p267 = pneg %p79
        %p268 = pneg %p103
        %p269 = pneg %p100
        %p270 = pneg %p124
        %p271 = pneg %p121
        %p272 = pneg %p145
        %p273 = pneg %p142
        %p274 = pneg %p166
        %p275 = pneg %p163
        %p276 = pneg %p192
        %p277 = pneg %p189
        %s278 = sand.u32 %s179, 1
        %s279 = sand.u32 %s179, 1
        %s280 = smul.addr %s279, 128
        %s281 = scalar_lea.vmem [#allocation3], %s280
        %s282 = smul.u32 16, %s19
        %s283 = ssub.s32 25, %s282
        %p284 = scmp.lt.s32.totalorder %s283, 16
        %s285 = scalar_select %p284, %s283, 16
        %s286 = smul.u32 128, %s285
        %p287 = scmp.lt.s32.totalorder %s282, 24
        %s288 = scalar_select %p287, %s282, 24
        %s289 = smul.addr %s288, 8
        %s290 = scalar_lea.vmem %s0, %s289
        %s291 = smul.u32 16, %s19
        %s292 = ssub.s32 25, %s291
        %p293 = scmp.lt.s32.totalorder %s292, 16
        %s294 = scalar_select %p293, %s292, 16
        %s295 = smul.u32 128, %s294
        %s296 = smul.u32 16, %s19
        %s297 = ssub.s32 25, %s296
        %p298 = scmp.lt.s32.totalorder %s297, 16
        %s299 = scalar_select %p298, %s297, 16
        %s300 = smul.u32 128, %s299
        %v301 = vld [vmem:[%s290] sm:$0xff]
        %v302 = vld [vmem:[%s290 + $0x8] sm:$0xff]
        %v303 = vld [vmem:[%s290 + $0x10] sm:$0xff]
        %v304 = vld [vmem:[%s290 + $0x18] sm:$0xff]
        %v305 = vld [vmem:[%s290 + $0x20] sm:$0xff]
        %v306 = vld [vmem:[%s290 + $0x28] sm:$0xff]
        %v307 = vld [vmem:[%s290 + $0x30] sm:$0xff]
        %v308 = vld [vmem:[%s290 + $0x38] sm:$0xff]
        %v309 = vld [vmem:[%s290 + $0x40] sm:$0xff]
        %v310 = vld [vmem:[%s290 + $0x48] sm:$0xff]
        %v311 = vld [vmem:[%s290 + $0x50] sm:$0xff]
        %v312 = vld [vmem:[%s290 + $0x58] sm:$0xff]
        %v313 = vld [vmem:[%s290 + $0x60] sm:$0xff]
        %v314 = vld [vmem:[%s290 + $0x68] sm:$0xff]
        %v315 = vld [vmem:[%s290 + $0x70] sm:$0xff]
        %v316 = vld [vmem:[%s290 + $0x78] sm:$0xff]
        %v317 = vld [vmem:[%s1] sm:$0xff]
        %v318 = vld [vmem:[%s1 + $0x8] sm:$0xff]
        %v319 = vld [vmem:[%s1 + $0x10] sm:$0xff]
        %v320 = vld [vmem:[%s1 + $0x18] sm:$0xff]
        %v321 = vld [vmem:[%s1 + $0x20] sm:$0xff]
        %v322 = vld [vmem:[%s1 + $0x28] sm:$0xff]
        %v323 = vld [vmem:[%s1 + $0x30] sm:$0xff]
        %v324 = vld [vmem:[%s1 + $0x38] sm:$0xff]
        %v325 = vld [vmem:[%s4] sm:$0x3]
        %v327 = vlaneseq
        %v328 = vshrl.u32 %v327, 7
        %v329 = vsub.s32 0, %v328
        %v330 = vrot.slane %v325, %v329
        %v331 = vlaneseq
        %v332 = vshrl.u32 %v331, 7
        %v333 = vsub.s32 1, %v332
        %v334 = vrot.slane %v325, %v333
        %vm337 = vcmask 261120
        %v339 = vsel %vm337, %v301, 0
        %v342 = vsel %vm337, %v302, 0
        %v345 = vsel %vm337, %v303, 0
        %v348 = vsel %vm337, %v304, 0
        %v351 = vsel %vm337, %v305, 0
        %v354 = vsel %vm337, %v306, 0
        %v357 = vsel %vm337, %v307, 0
        %v360 = vsel %vm337, %v308, 0
        %v363 = vsel %vm337, %v309, 0
        %v366 = vsel %vm337, %v310, 0
        %v369 = vsel %vm337, %v311, 0
        %v372 = vsel %vm337, %v312, 0
        %v375 = vsel %vm337, %v313, 0
        %v378 = vsel %vm337, %v314, 0
        %v381 = vsel %vm337, %v315, 0
        %v384 = vsel %vm337, %v316, 0
        %386 = vmatprep.subr.mxu0 %v318
        %387 = vmatpush1.msra.mxu0 %v317
        %388 = vmatprep.subr.mxu0 %v320
        %389 = vmatpush1.msra.mxu0 %v319
        %390 = vmatprep.subr.mxu0 %v322
        %391 = vmatpush1.msra.mxu0 %v321
        %392 = vmatprep.subr.mxu0 %v324
        %393 = vmatpush1.msra.mxu0 %v323
        %394 = vmatprep.subr.mxu0 0.0
        %395 = vmatpush1.msra.mxu0 0.0
        %396 = vmatprep.subr.mxu0 0.0
        %397 = vmatpush1.msra.mxu0 0.0
        %398 = vmatprep.subr.mxu0 0.0
        %399 = vmatpush1.msra.mxu0 0.0
        %400 = vmatprep.subr.mxu0 0.0
        %401 = vmatpush1.msra.mxu0 0.0
        %402 = vmatprep.subr.mxu0 0.0
        %403 = vmatpush1.msra.mxu0 0.0
        %404 = vmatprep.subr.mxu0 0.0
        %405 = vmatpush1.msra.mxu0 0.0
        %406 = vmatprep.subr.mxu0 0.0
        %407 = vmatpush1.msra.mxu0 0.0
        %408 = vmatprep.subr.mxu0 0.0
        %409 = vmatpush1.msra.mxu0 0.0
        %410 = vmatprep.subr.mxu0 0.0
        %411 = vmatpush1.msra.mxu0 0.0
        %412 = vmatprep.subr.mxu0 0.0
        %413 = vmatpush1.msra.mxu0 0.0
        %414 = vmatprep.subr.mxu0 0.0
        %415 = vmatpush1.msra.mxu0 0.0
        %416 = vmatprep.subr.mxu0 0.0
        %417 = vmatpush1.msra.mxu0 0.0
        %418 = vmatprep.subr.mxu0 0.0
        %419 = vmatpush1.msra.mxu0 0.0
        %420 = vmatprep.subr.mxu0 0.0
        %421 = vmatpush1.msra.mxu0 0.0
        %422 = vmatprep.subr.mxu0 0.0
        %423 = vmatpush1.msra.mxu0 0.0
        %424 = vmatprep.subr.mxu0 0.0
        %425 = vmatpush1.msra.mxu0 0.0
        %426 = vmatprep.subr.mxu0 0.0
        %427 = vmatpush1.msra.mxu0 0.0
        %428 = vmatprep.subr.mxu0 0.0
        %429 = vmatpush1.msra.mxu0 0.0
        %430 = vmatprep.subr.mxu0 0.0
        %431 = vmatpush1.msra.mxu0 0.0
        %432 = vmatprep.subr.mxu0 0.0
        %433 = vmatpush1.msra.mxu0 0.0
        %434 = vmatprep.subr.mxu0 0.0
        %435 = vmatpush1.msra.mxu0 0.0
        %436 = vmatprep.subr.mxu0 0.0
        %437 = vmatpush1.msra.mxu0 0.0
        %438 = vmatprep.subr.mxu0 0.0
        %439 = vmatpush1.msra.mxu0 0.0
        %440 = vmatprep.subr.mxu0 0.0
        %441 = vmatpush1.msra.mxu0 0.0
        %442 = vmatprep.subr.mxu0 0.0
        %443 = vmatpush1.msra.mxu0 0.0
        %444 = vmatprep.subr.mxu0 0.0
        %445 = vmatpush1.msra.mxu0 0.0
        %446 = vmatprep.subr.mxu0 0.0
        %447 = vmatpush1.msra.mxu0 0.0
        %448 = vmatprep.subr.mxu0 0.0
        %449 = vmatpush1.msra.mxu0 0.0
        %450 = vmatprep.mubr.f32.mxu0 0.0
        %451 = vmatmul.mubr.f32.gmra.mrb[0].mxu0 %v339
        %v452 = vpop.f32.mrb[0].mxu0
        %v453 = vadd.f32 %v330, %v452
        %v454 = vpop.f32.mrb[0].mxu0
        %v455 = vadd.f32 %v334, %v454
        %456 = vmatprep.mubr.f32.mxu0 0.0
        %457 = vmatmul.mubr.f32.gmra.mrb[0].mxu0 %v342
        %v458 = vpop.f32.mrb[0].mxu0
        %v459 = vadd.f32 %v330, %v458
        %v460 = vpop.f32.mrb[0].mxu0
        %v461 = vadd.f32 %v334, %v460
        %462 = vmatprep.mubr.f32.mxu0 0.0
        %463 = vmatmul.mubr.f32.gmra.mrb[0].mxu0 %v345
        %v464 = vpop.f32.mrb[0].mxu0
        %v465 = vadd.f32 %v330, %v464
        %v466 = vpop.f32.mrb[0].mxu0
        %v467 = vadd.f32 %v334, %v466
        %468 = vmatprep.mubr.f32.mxu0 0.0
        %469 = vmatmul.mubr.f32.gmra.mrb[0].mxu0 %v348
        %v470 = vpop.f32.mrb[0].mxu0
        %v471 = vadd.f32 %v330, %v470
        %v472 = vpop.f32.mrb[0].mxu0
        %v473 = vadd.f32 %v334, %v472
        %474 = vmatprep.mubr.f32.mxu0 0.0
        %475 = vmatmul.mubr.f32.gmra.mrb[0].mxu0 %v351
        %v476 = vpop.f32.mrb[0].mxu0
        %v477 = vadd.f32 %v330, %v476
        %v478 = vpop.f32.mrb[0].mxu0
        %v479 = vadd.f32 %v334, %v478
        %480 = vmatprep.mubr.f32.mxu0 0.0
        %481 = vmatmul.mubr.f32.gmra.mrb[0].mxu0 %v354
        %v482 = vpop.f32.mrb[0].mxu0
        %v483 = vadd.f32 %v330, %v482
        %v484 = vpop.f32.mrb[0].mxu0
        %v485 = vadd.f32 %v334, %v484
        %486 = vmatprep.mubr.f32.mxu0 0.0
        %487 = vmatmul.mubr.f32.gmra.mrb[0].mxu0 %v357
        %v488 = vpop.f32.mrb[0].mxu0
        %v489 = vadd.f32 %v330, %v488
        %v490 = vpop.f32.mrb[0].mxu0
        %v491 = vadd.f32 %v334, %v490
        %492 = vmatprep.mubr.f32.mxu0 0.0
        %493 = vmatmul.mubr.f32.gmra.mrb[0].mxu0 %v360
        %v494 = vpop.f32.mrb[0].mxu0
        %v495 = vadd.f32 %v330, %v494
        %v496 = vpop.f32.mrb[0].mxu0
        %v497 = vadd.f32 %v334, %v496
        %498 = vmatprep.mubr.f32.mxu0 0.0
        %499 = vmatmul.mubr.f32.gmra.mrb[0].mxu0 %v363
        %v500 = vpop.f32.mrb[0].mxu0
        %v501 = vadd.f32 %v330, %v500
        %v502 = vpop.f32.mrb[0].mxu0
        %v503 = vadd.f32 %v334, %v502
        %504 = vmatprep.mubr.f32.mxu0 0.0
        %505 = vmatmul.mubr.f32.gmra.mrb[0].mxu0 %v366
        %v506 = vpop.f32.mrb[0].mxu0
        %v507 = vadd.f32 %v330, %v506
        %v508 = vpop.f32.mrb[0].mxu0
        %v509 = vadd.f32 %v334, %v508
        %510 = vmatprep.mubr.f32.mxu0 0.0
        %511 = vmatmul.mubr.f32.gmra.mrb[0].mxu0 %v369
        %v512 = vpop.f32.mrb[0].mxu0
        %v513 = vadd.f32 %v330, %v512
        %v514 = vpop.f32.mrb[0].mxu0
        %v515 = vadd.f32 %v334, %v514
        %516 = vmatprep.mubr.f32.mxu0 0.0
        %517 = vmatmul.mubr.f32.gmra.mrb[0].mxu0 %v372
        %v518 = vpop.f32.mrb[0].mxu0
        %v519 = vadd.f32 %v330, %v518
        %v520 = vpop.f32.mrb[0].mxu0
        %v521 = vadd.f32 %v334, %v520
        %522 = vmatprep.mubr.f32.mxu0 0.0
        %523 = vmatmul.mubr.f32.gmra.mrb[0].mxu0 %v375
        %v524 = vpop.f32.mrb[0].mxu0
        %v525 = vadd.f32 %v330, %v524
        %v526 = vpop.f32.mrb[0].mxu0
        %v527 = vadd.f32 %v334, %v526
        %528 = vmatprep.mubr.f32.mxu0 0.0
        %529 = vmatmul.mubr.f32.gmra.mrb[0].mxu0 %v378
        %v530 = vpop.f32.mrb[0].mxu0
        %v531 = vadd.f32 %v330, %v530
        %v532 = vpop.f32.mrb[0].mxu0
        %v533 = vadd.f32 %v334, %v532
        %534 = vmatprep.mubr.f32.mxu0 0.0
        %535 = vmatmul.mubr.f32.gmra.mrb[0].mxu0 %v381
        %v536 = vpop.f32.mrb[0].mxu0
        %v537 = vadd.f32 %v330, %v536
        %v538 = vpop.f32.mrb[0].mxu0
        %v539 = vadd.f32 %v334, %v538
        %540 = vmatprep.mubr.f32.mxu0 0.0
        %541 = vmatmul.mubr.f32.gmra.mrb[0].mxu0 %v384
        %v542 = vpop.f32.mrb[0].mxu0
        %v543 = vadd.f32 %v330, %v542
        %v544 = vpop.f32.mrb[0].mxu0
        %v545 = vadd.f32 %v334, %v544
        %546 = vdwg.mxu0
        %v547 = vmax.f32 %v453, 0.0
        %v548 = vmax.f32 %v455, 0.0
        %v549 = vmax.f32 %v459, 0.0
        %v550 = vmax.f32 %v461, 0.0
        %v551 = vmax.f32 %v465, 0.0
        %v552 = vmax.f32 %v467, 0.0
        %v553 = vmax.f32 %v471, 0.0
        %v554 = vmax.f32 %v473, 0.0
        %v555 = vmax.f32 %v477, 0.0
        %v556 = vmax.f32 %v479, 0.0
        %v557 = vmax.f32 %v483, 0.0
        %v558 = vmax.f32 %v485, 0.0
        %v559 = vmax.f32 %v489, 0.0
        %v560 = vmax.f32 %v491, 0.0
        %v561 = vmax.f32 %v495, 0.0
        %v562 = vmax.f32 %v497, 0.0
        %v563 = vmax.f32 %v501, 0.0
        %v564 = vmax.f32 %v503, 0.0
        %v565 = vmax.f32 %v507, 0.0
        %v566 = vmax.f32 %v509, 0.0
        %v567 = vmax.f32 %v513, 0.0
        %v568 = vmax.f32 %v515, 0.0
        %v569 = vmax.f32 %v519, 0.0
        %v570 = vmax.f32 %v521, 0.0
        %v571 = vmax.f32 %v525, 0.0
        %v572 = vmax.f32 %v527, 0.0
        %v573 = vmax.f32 %v531, 0.0
        %v574 = vmax.f32 %v533, 0.0
        %v575 = vmax.f32 %v537, 0.0
        %v576 = vmax.f32 %v539, 0.0
        %v577 = vmax.f32 %v543, 0.0
        %v578 = vmax.f32 %v545, 0.0
        %v579 = vld [vmem:[%s2] sm:$0xff]
        %v580 = vld [vmem:[%s2 + $0x8] sm:$0xff]
        %v581 = vld [vmem:[%s2 + $0x10] sm:$0xff]
        %v582 = vld [vmem:[%s2 + $0x18] sm:$0xff]
        %v583 = vld [vmem:[%s2 + $0x20] sm:$0xff]
        %v584 = vld [vmem:[%s2 + $0x28] sm:$0xff]
        %v585 = vld [vmem:[%s2 + $0x30] sm:$0xff]
        %v586 = vld [vmem:[%s2 + $0x38] sm:$0xff]
        %v587 = vld [vmem:[%s2 + $0x40] sm:$0xff]
        %v588 = vld [vmem:[%s2 + $0x48] sm:$0xff]
        %v589 = vld [vmem:[%s2 + $0x50] sm:$0xff]
        %v590 = vld [vmem:[%s2 + $0x58] sm:$0xff]
        %v591 = vld [vmem:[%s2 + $0x60] sm:$0xff]
        %v592 = vld [vmem:[%s2 + $0x68] sm:$0xff]
        %v593 = vld [vmem:[%s2 + $0x70] sm:$0xff]
        %v594 = vld [vmem:[%s2 + $0x78] sm:$0xff]
        %v595 = vld [vmem:[%s2 + $0x80] sm:$0xff]
        %v596 = vld [vmem:[%s2 + $0x88] sm:$0xff]
        %v597 = vld [vmem:[%s2 + $0x90] sm:$0xff]
        %v598 = vld [vmem:[%s2 + $0x98] sm:$0xff]
        %v599 = vld [vmem:[%s2 + $0xa0] sm:$0xff]
        %v600 = vld [vmem:[%s2 + $0xa8] sm:$0xff]
        %v601 = vld [vmem:[%s2 + $0xb0] sm:$0xff]
        %v602 = vld [vmem:[%s2 + $0xb8] sm:$0xff]
        %v603 = vld [vmem:[%s2 + $0xc0] sm:$0xff]
        %v604 = vld [vmem:[%s2 + $0xc8] sm:$0xff]
        %v605 = vld [vmem:[%s2 + $0xd0] sm:$0xff]
        %v606 = vld [vmem:[%s2 + $0xd8] sm:$0xff]
        %v607 = vld [vmem:[%s2 + $0xe0] sm:$0xff]
        %v608 = vld [vmem:[%s2 + $0xe8] sm:$0xff]
        %v609 = vld [vmem:[%s2 + $0xf0] sm:$0xff]
        %v610 = vld [vmem:[%s2 + $0xf8] sm:$0xff]
        %v611 = vld [vmem:[%s4 + $0x2] sm:$0x1]
        %v613 = vlaneseq
        %v614 = vshrl.u32 %v613, 7
        %v615 = vsub.s32 0, %v614
        %v616 = vrot.slane %v611, %v615
        %618 = vmatprep.subr.mxu0 0.0
        %619 = vmatpush1.msra.mxu0 %v579
        %620 = vmatprep.subr.mxu0 0.0
        %621 = vmatpush1.msra.mxu0 %v580
        %622 = vmatprep.subr.mxu0 0.0
        %623 = vmatpush1.msra.mxu0 %v581
        %624 = vmatprep.subr.mxu0 0.0
        %625 = vmatpush1.msra.mxu0 %v582
        %626 = vmatprep.subr.mxu0 0.0
        %627 = vmatpush1.msra.mxu0 %v583
        %628 = vmatprep.subr.mxu0 0.0
        %629 = vmatpush1.msra.mxu0 %v584
        %630 = vmatprep.subr.mxu0 0.0
        %631 = vmatpush1.msra.mxu0 %v585
        %632 = vmatprep.subr.mxu0 0.0
        %633 = vmatpush1.msra.mxu0 %v586
        %634 = vmatprep.subr.mxu0 0.0
        %635 = vmatpush1.msra.mxu0 %v587
        %636 = vmatprep.subr.mxu0 0.0
        %637 = vmatpush1.msra.mxu0 %v588
        %638 = vmatprep.subr.mxu0 0.0
        %639 = vmatpush1.msra.mxu0 %v589
        %640 = vmatprep.subr.mxu0 0.0
        %641 = vmatpush1.msra.mxu0 %v590
        %642 = vmatprep.subr.mxu0 0.0
        %643 = vmatpush1.msra.mxu0 %v591
        %644 = vmatprep.subr.mxu0 0.0
        %645 = vmatpush1.msra.mxu0 %v592
        %646 = vmatprep.subr.mxu0 0.0
        %647 = vmatpush1.msra.mxu0 %v593
        %648 = vmatprep.subr.mxu0 0.0
        %649 = vmatpush1.msra.mxu0 %v594
        %650 = vmatprep.subr.mxu0 0.0
        %651 = vmatpush1.msra.mxu0 %v595
        %652 = vmatprep.subr.mxu0 0.0
        %653 = vmatpush1.msra.mxu0 %v596
        %654 = vmatprep.subr.mxu0 0.0
        %655 = vmatpush1.msra.mxu0 %v597
        %656 = vmatprep.subr.mxu0 0.0
        %657 = vmatpush1.msra.mxu0 %v598
        %658 = vmatprep.subr.mxu0 0.0
        %659 = vmatpush1.msra.mxu0 %v599
        %660 = vmatprep.subr.mxu0 0.0
        %661 = vmatpush1.msra.mxu0 %v600
        %662 = vmatprep.subr.mxu0 0.0
        %663 = vmatpush1.msra.mxu0 %v601
        %664 = vmatprep.subr.mxu0 0.0
        %665 = vmatpush1.msra.mxu0 %v602
        %666 = vmatprep.subr.mxu0 0.0
        %667 = vmatpush1.msra.mxu0 %v603
        %668 = vmatprep.subr.mxu0 0.0
        %669 = vmatpush1.msra.mxu0 %v604
        %670 = vmatprep.subr.mxu0 0.0
        %671 = vmatpush1.msra.mxu0 %v605
        %672 = vmatprep.subr.mxu0 0.0
        %673 = vmatpush1.msra.mxu0 %v606
        %674 = vmatprep.subr.mxu0 0.0
        %675 = vmatpush1.msra.mxu0 %v607
        %676 = vmatprep.subr.mxu0 0.0
        %677 = vmatpush1.msra.mxu0 %v608
        %678 = vmatprep.subr.mxu0 0.0
        %679 = vmatpush1.msra.mxu0 %v609
        %680 = vmatprep.subr.mxu0 0.0
        %681 = vmatpush1.msra.mxu0 %v610
        %682 = vmatprep.mubr.f32.mxu0 %v548
        %683 = vmatmul.mubr.f32.gmra.mrb[0].mxu0 %v547
        %v684 = vpop.f32.mrb[0].mxu0
        %v685 = vadd.f32 %v616, %v684
        %v686 = vpop.f32.mrb[0].mxu0
        %687 = vmatprep.mubr.f32.mxu0 %v550
        %688 = vmatmul.mubr.f32.gmra.mrb[0].mxu0 %v549
        %v689 = vpop.f32.mrb[0].mxu0
        %v690 = vadd.f32 %v616, %v689
        %v691 = vpop.f32.mrb[0].mxu0
        %692 = vmatprep.mubr.f32.mxu0 %v552
        %693 = vmatmul.mubr.f32.gmra.mrb[0].mxu0 %v551
        %v694 = vpop.f32.mrb[0].mxu0
        %v695 = vadd.f32 %v616, %v694
        %v696 = vpop.f32.mrb[0].mxu0
        %697 = vmatprep.mubr.f32.mxu0 %v554
        %698 = vmatmul.mubr.f32.gmra.mrb[0].mxu0 %v553
        %v699 = vpop.f32.mrb[0].mxu0
        %v700 = vadd.f32 %v616, %v699
        %v701 = vpop.f32.mrb[0].mxu0
        %702 = vmatprep.mubr.f32.mxu0 %v556
        %703 = vmatmul.mubr.f32.gmra.mrb[0].mxu0 %v555
        %v704 = vpop.f32.mrb[0].mxu0
        %v705 = vadd.f32 %v616, %v704
        %v706 = vpop.f32.mrb[0].mxu0
        %707 = vmatprep.mubr.f32.mxu0 %v558
        %708 = vmatmul.mubr.f32.gmra.mrb[0].mxu0 %v557
        %v709 = vpop.f32.mrb[0].mxu0
        %v710 = vadd.f32 %v616, %v709
        %v711 = vpop.f32.mrb[0].mxu0
        %712 = vmatprep.mubr.f32.mxu0 %v560
        %713 = vmatmul.mubr.f32.gmra.mrb[0].mxu0 %v559
        %v714 = vpop.f32.mrb[0].mxu0
        %v715 = vadd.f32 %v616, %v714
        %v716 = vpop.f32.mrb[0].mxu0
        %717 = vmatprep.mubr.f32.mxu0 %v562
        %718 = vmatmul.mubr.f32.gmra.mrb[0].mxu0 %v561
        %v719 = vpop.f32.mrb[0].mxu0
        %v720 = vadd.f32 %v616, %v719
        %v721 = vpop.f32.mrb[0].mxu0
        %722 = vmatprep.mubr.f32.mxu0 %v564
        %723 = vmatmul.mubr.f32.gmra.mrb[0].mxu0 %v563
        %v724 = vpop.f32.mrb[0].mxu0
        %v725 = vadd.f32 %v616, %v724
        %v726 = vpop.f32.mrb[0].mxu0
        %727 = vmatprep.mubr.f32.mxu0 %v566
        %728 = vmatmul.mubr.f32.gmra.mrb[0].mxu0 %v565
        %v729 = vpop.f32.mrb[0].mxu0
        %v730 = vadd.f32 %v616, %v729
        %v731 = vpop.f32.mrb[0].mxu0
        %732 = vmatprep.mubr.f32.mxu0 %v568
        %733 = vmatmul.mubr.f32.gmra.mrb[0].mxu0 %v567
        %v734 = vpop.f32.mrb[0].mxu0
        %v735 = vadd.f32 %v616, %v734
        %v736 = vpop.f32.mrb[0].mxu0
        %737 = vmatprep.mubr.f32.mxu0 %v570
        %738 = vmatmul.mubr.f32.gmra.mrb[0].mxu0 %v569
        %v739 = vpop.f32.mrb[0].mxu0
        %v740 = vadd.f32 %v616, %v739
        %v741 = vpop.f32.mrb[0].mxu0
        %742 = vmatprep.mubr.f32.mxu0 %v572
        %743 = vmatmul.mubr.f32.gmra.mrb[0].mxu0 %v571
        %v744 = vpop.f32.mrb[0].mxu0
        %v745 = vadd.f32 %v616, %v744
        %v746 = vpop.f32.mrb[0].mxu0
        %747 = vmatprep.mubr.f32.mxu0 %v574
        %748 = vmatmul.mubr.f32.gmra.mrb[0].mxu0 %v573
        %v749 = vpop.f32.mrb[0].mxu0
        %v750 = vadd.f32 %v616, %v749
        %v751 = vpop.f32.mrb[0].mxu0
        %752 = vmatprep.mubr.f32.mxu0 %v576
        %753 = vmatmul.mubr.f32.gmra.mrb[0].mxu0 %v575
        %v754 = vpop.f32.mrb[0].mxu0
        %v755 = vadd.f32 %v616, %v754
        %v756 = vpop.f32.mrb[0].mxu0
        %757 = vmatprep.mubr.f32.mxu0 %v578
        %758 = vmatmul.mubr.f32.gmra.mrb[0].mxu0 %v577
        %v759 = vpop.f32.mrb[0].mxu0
        %v760 = vadd.f32 %v616, %v759
        %v761 = vpop.f32.mrb[0].mxu0
        %762 = vdwg.mxu0
        %v763 = vmax.f32 %v685, 0.0
        %v764 = vmax.f32 %v690, 0.0
        %v765 = vmax.f32 %v695, 0.0
        %v766 = vmax.f32 %v700, 0.0
        %v767 = vmax.f32 %v705, 0.0
        %v768 = vmax.f32 %v710, 0.0
        %v769 = vmax.f32 %v715, 0.0
        %v770 = vmax.f32 %v720, 0.0
        %v771 = vmax.f32 %v725, 0.0
        %v772 = vmax.f32 %v730, 0.0
        %v773 = vmax.f32 %v735, 0.0
        %v774 = vmax.f32 %v740, 0.0
        %v775 = vmax.f32 %v745, 0.0
        %v776 = vmax.f32 %v750, 0.0
        %v777 = vmax.f32 %v755, 0.0
        %v778 = vmax.f32 %v760, 0.0
        %v779 = vld [vmem:[%s3] sm:$0xff]
        %v780 = vld [vmem:[%s3 + $0x8] sm:$0xff]
        %v781 = vld [vmem:[%s3 + $0x10] sm:$0xff]
        %v782 = vld [vmem:[%s3 + $0x18] sm:$0xff]
        %v783 = vld [vmem:[%s3 + $0x20] sm:$0xff]
        %v784 = vld [vmem:[%s3 + $0x28] sm:$0xff]
        %v785 = vld [vmem:[%s3 + $0x30] sm:$0xff]
        %v786 = vld [vmem:[%s3 + $0x38] sm:$0xff]
        %v787 = vld [vmem:[%s3 + $0x40] sm:$0xff]
        %v788 = vld [vmem:[%s3 + $0x48] sm:$0xff]
        %v789 = vld [vmem:[%s3 + $0x50] sm:$0xff]
        %v790 = vld [vmem:[%s3 + $0x58] sm:$0xff]
        %v791 = vld [vmem:[%s3 + $0x60] sm:$0xff]
        %v792 = vld [vmem:[%s3 + $0x68] sm:$0xff]
        %v793 = vld [vmem:[%s3 + $0x70] sm:$0xff]
        %v794 = vld [vmem:[%s3 + $0x78] sm:$0xff]
        %v795 = vld [vmem:[%s4 + $0x3] sm:$0x1]
        %v797 = vlaneseq
        %v798 = vshrl.u32 %v797, 7
        %v799 = vsub.s32 0, %v798
        %v800 = vrot.slane %v795, %v799
        %802 = vmatprep.subr.mxu0 0.0
        %803 = vmatpush1.msra.mxu0 %v779
        %804 = vmatprep.subr.mxu0 0.0
        %805 = vmatpush1.msra.mxu0 %v780
        %806 = vmatprep.subr.mxu0 0.0
        %807 = vmatpush1.msra.mxu0 %v781
        %808 = vmatprep.subr.mxu0 0.0
        %809 = vmatpush1.msra.mxu0 %v782
        %810 = vmatprep.subr.mxu0 0.0
        %811 = vmatpush1.msra.mxu0 %v783
        %812 = vmatprep.subr.mxu0 0.0
        %813 = vmatpush1.msra.mxu0 %v784
        %814 = vmatprep.subr.mxu0 0.0
        %815 = vmatpush1.msra.mxu0 %v785
        %816 = vmatprep.subr.mxu0 0.0
        %817 = vmatpush1.msra.mxu0 %v786
        %818 = vmatprep.subr.mxu0 0.0
        %819 = vmatpush1.msra.mxu0 %v787
        %820 = vmatprep.subr.mxu0 0.0
        %821 = vmatpush1.msra.mxu0 %v788
        %822 = vmatprep.subr.mxu0 0.0
        %823 = vmatpush1.msra.mxu0 %v789
        %824 = vmatprep.subr.mxu0 0.0
        %825 = vmatpush1.msra.mxu0 %v790
        %826 = vmatprep.subr.mxu0 0.0
        %827 = vmatpush1.msra.mxu0 %v791
        %828 = vmatprep.subr.mxu0 0.0
        %829 = vmatpush1.msra.mxu0 %v792
        %830 = vmatprep.subr.mxu0 0.0
        %831 = vmatpush1.msra.mxu0 %v793
        %832 = vmatprep.subr.mxu0 0.0
        %833 = vmatpush1.msra.mxu0 %v794
        %834 = vmatprep.subr.mxu0 0.0
        %835 = vmatpush1.msra.mxu0 0.0
        %836 = vmatprep.subr.mxu0 0.0
        %837 = vmatpush1.msra.mxu0 0.0
        %838 = vmatprep.subr.mxu0 0.0
        %839 = vmatpush1.msra.mxu0 0.0
        %840 = vmatprep.subr.mxu0 0.0
        %841 = vmatpush1.msra.mxu0 0.0
        %842 = vmatprep.subr.mxu0 0.0
        %843 = vmatpush1.msra.mxu0 0.0
        %844 = vmatprep.subr.mxu0 0.0
        %845 = vmatpush1.msra.mxu0 0.0
        %846 = vmatprep.subr.mxu0 0.0
        %847 = vmatpush1.msra.mxu0 0.0
        %848 = vmatprep.subr.mxu0 0.0
        %849 = vmatpush1.msra.mxu0 0.0
        %850 = vmatprep.subr.mxu0 0.0
        %851 = vmatpush1.msra.mxu0 0.0
        %852 = vmatprep.subr.mxu0 0.0
        %853 = vmatpush1.msra.mxu0 0.0
        %854 = vmatprep.subr.mxu0 0.0
        %855 = vmatpush1.msra.mxu0 0.0
        %856 = vmatprep.subr.mxu0 0.0
        %857 = vmatpush1.msra.mxu0 0.0
        %858 = vmatprep.subr.mxu0 0.0
        %859 = vmatpush1.msra.mxu0 0.0
        %860 = vmatprep.subr.mxu0 0.0
        %861 = vmatpush1.msra.mxu0 0.0
        %862 = vmatprep.subr.mxu0 0.0
        %863 = vmatpush1.msra.mxu0 0.0
        %864 = vmatprep.subr.mxu0 0.0
        %865 = vmatpush1.msra.mxu0 0.0
        %866 = vmatprep.mubr.f32.mxu0 0.0
        %867 = vmatmul.mubr.f32.gmra.mrb[0].mxu0 %v763
        %v868 = vpop.f32.mrb[0].mxu0
        %v869 = vadd.f32 %v800, %v868
        %v870 = vpop.f32.mrb[0].mxu0
        %871 = vmatprep.mubr.f32.mxu0 0.0
        %872 = vmatmul.mubr.f32.gmra.mrb[0].mxu0 %v764
        %v873 = vpop.f32.mrb[0].mxu0
        %v874 = vadd.f32 %v800, %v873
        %v875 = vpop.f32.mrb[0].mxu0
        %876 = vmatprep.mubr.f32.mxu0 0.0
        %877 = vmatmul.mubr.f32.gmra.mrb[0].mxu0 %v765
        %v878 = vpop.f32.mrb[0].mxu0
        %v879 = vadd.f32 %v800, %v878
        %v880 = vpop.f32.mrb[0].mxu0
        %881 = vmatprep.mubr.f32.mxu0 0.0
        %882 = vmatmul.mubr.f32.gmra.mrb[0].mxu0 %v766
        %v883 = vpop.f32.mrb[0].mxu0
        %v884 = vadd.f32 %v800, %v883
        %v885 = vpop.f32.mrb[0].mxu0
        %886 = vmatprep.mubr.f32.mxu0 0.0
        %887 = vmatmul.mubr.f32.gmra.mrb[0].mxu0 %v767
        %v888 = vpop.f32.mrb[0].mxu0
        %v889 = vadd.f32 %v800, %v888
        %v890 = vpop.f32.mrb[0].mxu0
        %891 = vmatprep.mubr.f32.mxu0 0.0
        %892 = vmatmul.mubr.f32.gmra.mrb[0].mxu0 %v768
        %v893 = vpop.f32.mrb[0].mxu0
        %v894 = vadd.f32 %v800, %v893
        %v895 = vpop.f32.mrb[0].mxu0
        %896 = vmatprep.mubr.f32.mxu0 0.0
        %897 = vmatmul.mubr.f32.gmra.mrb[0].mxu0 %v769
        %v898 = vpop.f32.mrb[0].mxu0
        %v899 = vadd.f32 %v800, %v898
        %v900 = vpop.f32.mrb[0].mxu0
        %901 = vmatprep.mubr.f32.mxu0 0.0
        %902 = vmatmul.mubr.f32.gmra.mrb[0].mxu0 %v770
        %v903 = vpop.f32.mrb[0].mxu0
        %v904 = vadd.f32 %v800, %v903
        %v905 = vpop.f32.mrb[0].mxu0
        %906 = vmatprep.mubr.f32.mxu0 0.0
        %907 = vmatmul.mubr.f32.gmra.mrb[0].mxu0 %v771
        %v908 = vpop.f32.mrb[0].mxu0
        %v909 = vadd.f32 %v800, %v908
        %v910 = vpop.f32.mrb[0].mxu0
        %911 = vmatprep.mubr.f32.mxu0 0.0
        %912 = vmatmul.mubr.f32.gmra.mrb[0].mxu0 %v772
        %v913 = vpop.f32.mrb[0].mxu0
        %v914 = vadd.f32 %v800, %v913
        %v915 = vpop.f32.mrb[0].mxu0
        %916 = vmatprep.mubr.f32.mxu0 0.0
        %917 = vmatmul.mubr.f32.gmra.mrb[0].mxu0 %v773
        %v918 = vpop.f32.mrb[0].mxu0
        %v919 = vadd.f32 %v800, %v918
        %v920 = vpop.f32.mrb[0].mxu0
        %921 = vmatprep.mubr.f32.mxu0 0.0
        %922 = vmatmul.mubr.f32.gmra.mrb[0].mxu0 %v774
        %v923 = vpop.f32.mrb[0].mxu0
        %v924 = vadd.f32 %v800, %v923
        %v925 = vpop.f32.mrb[0].mxu0
        %926 = vmatprep.mubr.f32.mxu0 0.0
        %927 = vmatmul.mubr.f32.gmra.mrb[0].mxu0 %v775
        %v928 = vpop.f32.mrb[0].mxu0
        %v929 = vadd.f32 %v800, %v928
        %v930 = vpop.f32.mrb[0].mxu0
        %931 = vmatprep.mubr.f32.mxu0 0.0
        %932 = vmatmul.mubr.f32.gmra.mrb[0].mxu0 %v776
        %v933 = vpop.f32.mrb[0].mxu0
        %v934 = vadd.f32 %v800, %v933
        %v935 = vpop.f32.mrb[0].mxu0
        %936 = vmatprep.mubr.f32.mxu0 0.0
        %937 = vmatmul.mubr.f32.gmra.mrb[0].mxu0 %v777
        %v938 = vpop.f32.mrb[0].mxu0
        %v939 = vadd.f32 %v800, %v938
        %v940 = vpop.f32.mrb[0].mxu0
        %941 = vmatprep.mubr.f32.mxu0 0.0
        %942 = vmatmul.mubr.f32.gmra.mrb[0].mxu0 %v778
        %v943 = vpop.f32.mrb[0].mxu0
        %v944 = vadd.f32 %v800, %v943
        %v945 = vpop.f32.mrb[0].mxu0
        %946 = vdwg.mxu0
        %v947 = vmax.f32 %v869, 0.0
        %v948 = vmax.f32 %v874, 0.0
        %v949 = vmax.f32 %v879, 0.0
        %v950 = vmax.f32 %v884, 0.0
        %v951 = vmax.f32 %v889, 0.0
        %v952 = vmax.f32 %v894, 0.0
        %v953 = vmax.f32 %v899, 0.0
        %v954 = vmax.f32 %v904, 0.0
        %v955 = vmax.f32 %v909, 0.0
        %v956 = vmax.f32 %v914, 0.0
        %v957 = vmax.f32 %v919, 0.0
        %v958 = vmax.f32 %v924, 0.0
        %v959 = vmax.f32 %v929, 0.0
        %v960 = vmax.f32 %v934, 0.0
        %v961 = vmax.f32 %v939, 0.0
        %v962 = vmax.f32 %v944, 0.0
        %v963 = vld [vmem:[%s5] sm:$0x1]
        %v965 = vlaneseq
        %v966 = vshrl.u32 %v965, 7
        %v967 = vsub.s32 0, %v966
        %v968 = vrot.slane %v963, %v967
        %v970 = vmul.f32 %v947, %v968
        %v971 = vmul.f32 %v948, %v968
        %v972 = vmul.f32 %v949, %v968
        %v973 = vmul.f32 %v950, %v968
        %v974 = vmul.f32 %v951, %v968
        %v975 = vmul.f32 %v952, %v968
        %v976 = vmul.f32 %v953, %v968
        %v977 = vmul.f32 %v954, %v968
        %v978 = vmul.f32 %v955, %v968
        %v979 = vmul.f32 %v956, %v968
        %v980 = vmul.f32 %v957, %v968
        %v981 = vmul.f32 %v958, %v968
        %v982 = vmul.f32 %v959, %v968
        %v983 = vmul.f32 %v960, %v968
        %v984 = vmul.f32 %v961, %v968
        %v985 = vmul.f32 %v962, %v968
        %vm986 = vcmask 523264
        %v987 = vsel %vm986, %v970, 0.0
        %988 = vadd.xlane.f32.xlu0 %v987
        %v989 = vpop.xlane.xlu0 %988
        %v990 = vsel %vm986, %v971, 0.0
        %991 = vadd.xlane.f32.xlu0 %v990
        %v992 = vpop.xlane.xlu0 %991
        %v993 = vsel %vm986, %v972, 0.0
        %994 = vadd.xlane.f32.xlu0 %v993
        %v995 = vpop.xlane.xlu0 %994
        %v996 = vsel %vm986, %v973, 0.0
        %997 = vadd.xlane.f32.xlu0 %v996
        %v998 = vpop.xlane.xlu0 %997
        %v999 = vsel %vm986, %v974, 0.0
        %1000 = vadd.xlane.f32.xlu0 %v999
        %v1001 = vpop.xlane.xlu0 %1000
        %v1002 = vsel %vm986, %v975, 0.0
        %1003 = vadd.xlane.f32.xlu0 %v1002
        %v1004 = vpop.xlane.xlu0 %1003
        %v1005 = vsel %vm986, %v976, 0.0
        %1006 = vadd.xlane.f32.xlu0 %v1005
        %v1007 = vpop.xlane.xlu0 %1006
        %v1008 = vsel %vm986, %v977, 0.0
        %1009 = vadd.xlane.f32.xlu0 %v1008
        %v1010 = vpop.xlane.xlu0 %1009
        %v1011 = vsel %vm986, %v978, 0.0
        %1012 = vadd.xlane.f32.xlu0 %v1011
        %v1013 = vpop.xlane.xlu0 %1012
        %v1014 = vsel %vm986, %v979, 0.0
        %1015 = vadd.xlane.f32.xlu0 %v1014
        %v1016 = vpop.xlane.xlu0 %1015
        %v1017 = vsel %vm986, %v980, 0.0
        %1018 = vadd.xlane.f32.xlu0 %v1017
        %v1019 = vpop.xlane.xlu0 %1018
        %v1020 = vsel %vm986, %v981, 0.0
        %1021 = vadd.xlane.f32.xlu0 %v1020
        %v1022 = vpop.xlane.xlu0 %1021
        %v1023 = vsel %vm986, %v982, 0.0
        %1024 = vadd.xlane.f32.xlu0 %v1023
        %v1025 = vpop.xlane.xlu0 %1024
        %v1026 = vsel %vm986, %v983, 0.0
        %1027 = vadd.xlane.f32.xlu0 %v1026
        %v1028 = vpop.xlane.xlu0 %1027
        %v1029 = vsel %vm986, %v984, 0.0
        %1030 = vadd.xlane.f32.xlu0 %v1029
        %v1031 = vpop.xlane.xlu0 %1030
        %v1032 = vsel %vm986, %v985, 0.0
        %1033 = vadd.xlane.f32.xlu0 %v1032
        %v1034 = vpop.xlane.xlu0 %1033
        %s1035 = sld [smem:[#allocation2]]
        %v1036 = vstv %s1035
        %v1037 = vadd.f32 %v989, %v1036
        %v1038 = vadd.f32 %v992, %v1036
        %v1039 = vadd.f32 %v995, %v1036
        %v1040 = vadd.f32 %v998, %v1036
        %v1041 = vadd.f32 %v1001, %v1036
        %v1042 = vadd.f32 %v1004, %v1036
        %v1043 = vadd.f32 %v1007, %v1036
        %v1044 = vadd.f32 %v1010, %v1036
        %v1045 = vadd.f32 %v1013, %v1036
        %v1046 = vadd.f32 %v1016, %v1036
        %v1047 = vadd.f32 %v1019, %v1036
        %v1048 = vadd.f32 %v1022, %v1036
        %v1049 = vadd.f32 %v1025, %v1036
        %v1050 = vadd.f32 %v1028, %v1036
        %v1051 = vadd.f32 %v1031, %v1036
        %v1052 = vadd.f32 %v1034, %v1036
        %vm1053 = vcmask 7168
        %1054 = vst.msk [vmem:[%s281] sm:$0xff] %vm1053, %v1037
        %1055 = vst.msk [vmem:[%s281 + $0x8] sm:$0xff] %vm1053, %v1038
        %1056 = vst.msk [vmem:[%s281 + $0x10] sm:$0xff] %vm1053, %v1039
        %1057 = vst.msk [vmem:[%s281 + $0x18] sm:$0xff] %vm1053, %v1040
        %1058 = vst.msk [vmem:[%s281 + $0x20] sm:$0xff] %vm1053, %v1041
        %1059 = vst.msk [vmem:[%s281 + $0x28] sm:$0xff] %vm1053, %v1042
        %1060 = vst.msk [vmem:[%s281 + $0x30] sm:$0xff] %vm1053, %v1043
        %1061 = vst.msk [vmem:[%s281 + $0x38] sm:$0xff] %vm1053, %v1044
        %1062 = vst.msk [vmem:[%s281 + $0x40] sm:$0xff] %vm1053, %v1045
        %1063 = vst.msk [vmem:[%s281 + $0x48] sm:$0xff] %vm1053, %v1046
        %1064 = vst.msk [vmem:[%s281 + $0x50] sm:$0xff] %vm1053, %v1047
        %1065 = vst.msk [vmem:[%s281 + $0x58] sm:$0xff] %vm1053, %v1048
        %1066 = vst.msk [vmem:[%s281 + $0x60] sm:$0xff] %vm1053, %v1049
        %1067 = vst.msk [vmem:[%s281 + $0x68] sm:$0xff] %vm1053, %v1050
        %1068 = vst.msk [vmem:[%s281 + $0x70] sm:$0xff] %vm1053, %v1051
        %1069 = vst.msk [vmem:[%s281 + $0x78] sm:$0xff] %vm1053, %v1052
        %s1070 = sand.u32 %s179, 1
        %s1071 = sand.u32 %s179, 1
        %s1072 = smul.addr %s1071, 128
        %s1073 = scalar_lea.vmem [#allocation3], %s1072
        // Predicated region
        $region49: #{ddg_predictor_forward.1} parent=47 // pred_check
          %p1074 = pneg %p189
        $region50: #{ddg_predictor_forward.1} parent=47 // pred_check_branch
          %1076 = sbr.rel (%p1074) target = $region52
        $region51: #{ddg_predictor_forward.1} parent=47 // pred_region
          %s1077 = smul.u32 16, %s19
          %s1078 = ssub.s32 25, %s1077
          %p1079 = scmp.lt.s32.totalorder %s1078, 16
          %s1080 = scalar_select %p1079, %s1078, 16
          %s1081 = smul.u32 128, %s1080
          %p1082 = scmp.ne.s32.totalorder 0, %s1081
          %s1083 = smul.addr %s1077, 8
          %s1084 = scalar_lea.vmem %s7, %s1083
          // Predicated region
          $region53: #{ddg_predictor_forward.1} parent=51 // pred_check
            %p1085 = pneg %p1082
          $region54: #{ddg_predictor_forward.1} parent=51 // pred_check_branch
            %1087 = sbr.rel (%p1085) target = $region56
          $region55: #{ddg_predictor_forward.1} parent=51 // pred_region
            // Predicated region
            $region57: #{ddg_predictor_forward.1} parent=55 // pred_check
              _
            $region58: #{ddg_predictor_forward.1} parent=55 // pred_check_branch
              %1089 = sbr.rel (0) target = $region60
            $region59: #{ddg_predictor_forward.1} parent=55 // pred_region
              // Predicated region
              $region79: #{ddg_predictor_forward.1} parent=59 // pred_check
                _
              $region80: #{ddg_predictor_forward.1} parent=59 // pred_check_branch
                %1168 = sbr.rel (0) target = $region82
              $region81: #{ddg_predictor_forward.1} parent=59 // pred_region
                %s1169 = sshrl.u32 %s1080, 4
                // While loop
                $region83: #{ddg_predictor_forward.1} parent=81 // loop_pre_header
                  _
                $region84: #{ddg_predictor_forward.1} parent=81 // loop_header
                  %s1171 = sphi 0, %s1173
                  %p1172 = scmp.ge.s32.totalorder %s1171, %s1169
                  %s1176 = sphi 0, %s1213
                  %s1177 = sphi %s1073, %s1216
                  %s1178 = sphi %s1084, %s1217
                $region85: #{ddg_predictor_forward.1} parent=81 // loop_header_branch
                  %1175 = sbr.rel (%p1172) target = $region89
                $region86: #{ddg_predictor_forward.1} parent=81 // loop_body
                  %v1179 = vld [vmem:[%s1177] sm:$0xff]
                  %1180 = vst [vmem:[%s1178] sm:$0xff] %v1179
                  %v1181 = vld [vmem:[%s1177 + $0x8] sm:$0xff]
                  %1182 = vst [vmem:[%s1178 + $0x8] sm:$0xff] %v1181
                  %v1183 = vld [vmem:[%s1177 + $0x10] sm:$0xff]
                  %1184 = vst [vmem:[%s1178 + $0x10] sm:$0xff] %v1183
                  %v1185 = vld [vmem:[%s1177 + $0x18] sm:$0xff]
                  %1186 = vst [vmem:[%s1178 + $0x18] sm:$0xff] %v1185
                  %v1187 = vld [vmem:[%s1177 + $0x20] sm:$0xff]
                  %1188 = vst [vmem:[%s1178 + $0x20] sm:$0xff] %v1187
                  %v1189 = vld [vmem:[%s1177 + $0x28] sm:$0xff]
                  %1190 = vst [vmem:[%s1178 + $0x28] sm:$0xff] %v1189
                  %v1191 = vld [vmem:[%s1177 + $0x30] sm:$0xff]
                  %1192 = vst [vmem:[%s1178 + $0x30] sm:$0xff] %v1191
                  %v1193 = vld [vmem:[%s1177 + $0x38] sm:$0xff]
                  %1194 = vst [vmem:[%s1178 + $0x38] sm:$0xff] %v1193
                  %v1195 = vld [vmem:[%s1177 + $0x40] sm:$0xff]
                  %1196 = vst [vmem:[%s1178 + $0x40] sm:$0xff] %v1195
                  %v1197 = vld [vmem:[%s1177 + $0x48] sm:$0xff]
                  %1198 = vst [vmem:[%s1178 + $0x48] sm:$0xff] %v1197
                  %v1199 = vld [vmem:[%s1177 + $0x50] sm:$0xff]
                  %1200 = vst [vmem:[%s1178 + $0x50] sm:$0xff] %v1199
                  %v1201 = vld [vmem:[%s1177 + $0x58] sm:$0xff]
                  %1202 = vst [vmem:[%s1178 + $0x58] sm:$0xff] %v1201
                  %v1203 = vld [vmem:[%s1177 + $0x60] sm:$0xff]
                  %1204 = vst [vmem:[%s1178 + $0x60] sm:$0xff] %v1203
                  %v1205 = vld [vmem:[%s1177 + $0x68] sm:$0xff]
                  %1206 = vst [vmem:[%s1178 + $0x68] sm:$0xff] %v1205
                  %v1207 = vld [vmem:[%s1177 + $0x70] sm:$0xff]
                  %1208 = vst [vmem:[%s1178 + $0x70] sm:$0xff] %v1207
                  %v1209 = vld [vmem:[%s1177 + $0x78] sm:$0xff]
                  %1210 = vst [vmem:[%s1178 + $0x78] sm:$0xff] %v1209
                  %s1211 = sadd.s32 1, %s1176
                  %p1212 = scmp.ge.s32.totalorder %s1211, %s1169
                  %s1213 = scalar_select %p1212, 0, %s1211
                  %s1214 = smul.u32 %s1213, 128
                  %s1215 = smul.u32 %s1213, 128
                  %s1216 = scalar_lea.vmem %s1073, %s1214 [#allocation3]
                  %s1217 = scalar_lea.vmem %s1084, %s1215
                $region87: #{ddg_predictor_forward.1} parent=81 // loop_footer
                  %s1173 = sadd.s32 %s1171, 1
                $region88: #{ddg_predictor_forward.1} parent=81 // loop_footer_branch
                  %1170 = sbr.rel target = $region84
                $region89: #{ddg_predictor_forward.1} parent=81 // loop_exit
                  _
                %s1218 = sshrl.u32 %s1080, 4
                %s1219 = sand.u32 %s1080, 15
                %s1220 = smul.u32 %s1218, 16
                %s1221 = smul.u32 8, %s1220
                %s1222 = scalar_lea.vmem %s1073, %s1221 [#allocation3]
                %s1223 = smul.u32 8, %s1220
                %s1224 = scalar_lea.vmem %s1084, %s1223
                // While loop
                $region90: #{ddg_predictor_forward.1} parent=81 // loop_pre_header
                  _
                $region91: #{ddg_predictor_forward.1} parent=81 // loop_header
                  %s1226 = sphi 0, %s1228
                  %p1227 = scmp.ge.s32.totalorder %s1226, %s1219
                  %s1231 = sphi 0, %s1238
                  %s1232 = sphi %s1222, %s1241
                  %s1233 = sphi %s1224, %s1242
                $region92: #{ddg_predictor_forward.1} parent=81 // loop_header_branch
                  %1230 = sbr.rel (%p1227) target = $region96
                $region93: #{ddg_predictor_forward.1} parent=81 // loop_body
                  %v1234 = vld [vmem:[%s1232] sm:$0xff]
                  %1235 = vst [vmem:[%s1233] sm:$0xff] %v1234
                  %s1236 = sadd.s32 1, %s1231
                  %p1237 = scmp.ge.s32.totalorder %s1236, %s1219
                  %s1238 = scalar_select %p1237, 0, %s1236
                  %s1239 = smul.u32 %s1238, 8
                  %s1240 = smul.u32 %s1238, 8
                  %s1241 = scalar_lea.vmem %s1222, %s1239 [#allocation3]
                  %s1242 = scalar_lea.vmem %s1224, %s1240
                $region94: #{ddg_predictor_forward.1} parent=81 // loop_footer
                  %s1228 = sadd.s32 %s1226, 1
                $region95: #{ddg_predictor_forward.1} parent=81 // loop_footer_branch
                  %1225 = sbr.rel target = $region91
                $region96: #{ddg_predictor_forward.1} parent=81 // loop_exit
                  _
              $region82: #{ddg_predictor_forward.1} parent=59 // pred_fallthru
                _
              // Predicated region
              $region97: #{ddg_predictor_forward.1} parent=59 // pred_check
                _
              $region98: #{ddg_predictor_forward.1} parent=59 // pred_check_branch
                %1244 = sbr.rel target = $region100
              $region99: #{ddg_predictor_forward.1} parent=59 // pred_region
                _
              $region100: #{ddg_predictor_forward.1} parent=59 // pred_fallthru
                _
            $region60: #{ddg_predictor_forward.1} parent=55 // pred_fallthru
              _
            // Predicated region
            $region61: #{ddg_predictor_forward.1} parent=55 // pred_check
              _
            $region62: #{ddg_predictor_forward.1} parent=55 // pred_check_branch
              %1091 = sbr.rel target = $region64
            $region63: #{ddg_predictor_forward.1} parent=55 // pred_region
              %s1093 = sshrl.u32 %s1080, 4
              // While loop
              $region65: #{ddg_predictor_forward.1} parent=63 // loop_pre_header
                _
              $region66: #{ddg_predictor_forward.1} parent=63 // loop_header
                %s1095 = sphi 0, %s1097
                %p1096 = scmp.ge.s32.totalorder %s1095, %s1093
                %s1100 = sphi 0, %s1137
                %s1101 = sphi %s1073, %s1140
                %s1102 = sphi %s1084, %s1141
              $region67: #{ddg_predictor_forward.1} parent=63 // loop_header_branch
                %1099 = sbr.rel (%p1096) target = $region71
              $region68: #{ddg_predictor_forward.1} parent=63 // loop_body
                %v1103 = vld [vmem:[%s1101] sm:$0xff]
                %1104 = vst [vmem:[%s1102] sm:$0xff] %v1103
                %v1105 = vld [vmem:[%s1101 + $0x8] sm:$0xff]
                %1106 = vst [vmem:[%s1102 + $0x8] sm:$0xff] %v1105
                %v1107 = vld [vmem:[%s1101 + $0x10] sm:$0xff]
                %1108 = vst [vmem:[%s1102 + $0x10] sm:$0xff] %v1107
                %v1109 = vld [vmem:[%s1101 + $0x18] sm:$0xff]
                %1110 = vst [vmem:[%s1102 + $0x18] sm:$0xff] %v1109
                %v1111 = vld [vmem:[%s1101 + $0x20] sm:$0xff]
                %1112 = vst [vmem:[%s1102 + $0x20] sm:$0xff] %v1111
                %v1113 = vld [vmem:[%s1101 + $0x28] sm:$0xff]
                %1114 = vst [vmem:[%s1102 + $0x28] sm:$0xff] %v1113
                %v1115 = vld [vmem:[%s1101 + $0x30] sm:$0xff]
                %1116 = vst [vmem:[%s1102 + $0x30] sm:$0xff] %v1115
                %v1117 = vld [vmem:[%s1101 + $0x38] sm:$0xff]
                %1118 = vst [vmem:[%s1102 + $0x38] sm:$0xff] %v1117
                %v1119 = vld [vmem:[%s1101 + $0x40] sm:$0xff]
                %1120 = vst [vmem:[%s1102 + $0x40] sm:$0xff] %v1119
                %v1121 = vld [vmem:[%s1101 + $0x48] sm:$0xff]
                %1122 = vst [vmem:[%s1102 + $0x48] sm:$0xff] %v1121
                %v1123 = vld [vmem:[%s1101 + $0x50] sm:$0xff]
                %1124 = vst [vmem:[%s1102 + $0x50] sm:$0xff] %v1123
                %v1125 = vld [vmem:[%s1101 + $0x58] sm:$0xff]
                %1126 = vst [vmem:[%s1102 + $0x58] sm:$0xff] %v1125
                %v1127 = vld [vmem:[%s1101 + $0x60] sm:$0xff]
                %1128 = vst [vmem:[%s1102 + $0x60] sm:$0xff] %v1127
                %v1129 = vld [vmem:[%s1101 + $0x68] sm:$0xff]
                %1130 = vst [vmem:[%s1102 + $0x68] sm:$0xff] %v1129
                %v1131 = vld [vmem:[%s1101 + $0x70] sm:$0xff]
                %1132 = vst [vmem:[%s1102 + $0x70] sm:$0xff] %v1131
                %v1133 = vld [vmem:[%s1101 + $0x78] sm:$0xff]
                %1134 = vst [vmem:[%s1102 + $0x78] sm:$0xff] %v1133
                %s1135 = sadd.s32 1, %s1100
                %p1136 = scmp.ge.s32.totalorder %s1135, %s1093
                %s1137 = scalar_select %p1136, 0, %s1135
                %s1138 = smul.u32 %s1137, 128
                %s1139 = smul.u32 %s1137, 128
                %s1140 = scalar_lea.vmem %s1073, %s1138 [#allocation3]
                %s1141 = scalar_lea.vmem %s1084, %s1139
              $region69: #{ddg_predictor_forward.1} parent=63 // loop_footer
                %s1097 = sadd.s32 %s1095, 1
              $region70: #{ddg_predictor_forward.1} parent=63 // loop_footer_branch
                %1094 = sbr.rel target = $region66
              $region71: #{ddg_predictor_forward.1} parent=63 // loop_exit
                _
              %s1142 = sshrl.u32 %s1080, 4
              %s1143 = sand.u32 %s1080, 15
              %s1144 = smul.u32 %s1142, 16
              %s1145 = smul.u32 8, %s1144
              %s1146 = scalar_lea.vmem %s1073, %s1145 [#allocation3]
              %s1147 = smul.u32 8, %s1144
              %s1148 = scalar_lea.vmem %s1084, %s1147
              // While loop
              $region72: #{ddg_predictor_forward.1} parent=63 // loop_pre_header
                _
              $region73: #{ddg_predictor_forward.1} parent=63 // loop_header
                %s1150 = sphi 0, %s1152
                %p1151 = scmp.ge.s32.totalorder %s1150, %s1143
                %s1155 = sphi 0, %s1162
                %s1156 = sphi %s1146, %s1165
                %s1157 = sphi %s1148, %s1166
              $region74: #{ddg_predictor_forward.1} parent=63 // loop_header_branch
                %1154 = sbr.rel (%p1151) target = $region78
              $region75: #{ddg_predictor_forward.1} parent=63 // loop_body
                %v1158 = vld [vmem:[%s1156] sm:$0xff]
                %1159 = vst [vmem:[%s1157] sm:$0xff] %v1158
                %s1160 = sadd.s32 1, %s1155
                %p1161 = scmp.ge.s32.totalorder %s1160, %s1143
                %s1162 = scalar_select %p1161, 0, %s1160
                %s1163 = smul.u32 %s1162, 8
                %s1164 = smul.u32 %s1162, 8
                %s1165 = scalar_lea.vmem %s1146, %s1163 [#allocation3]
                %s1166 = scalar_lea.vmem %s1148, %s1164
              $region76: #{ddg_predictor_forward.1} parent=63 // loop_footer
                %s1152 = sadd.s32 %s1150, 1
              $region77: #{ddg_predictor_forward.1} parent=63 // loop_footer_branch
                %1149 = sbr.rel target = $region73
              $region78: #{ddg_predictor_forward.1} parent=63 // loop_exit
                _
            $region64: #{ddg_predictor_forward.1} parent=55 // pred_fallthru
              _
          $region56: #{ddg_predictor_forward.1} parent=51 // pred_fallthru
            _
          %1245 = vnop
        $region52: #{ddg_predictor_forward.1} parent=47 // pred_fallthru
          _
      $region48: #{ddg_predictor_forward.1} parent=5 // pred_fallthru
        _
      %p1246 = scmp.le.s32.totalorder 2, %s14
      // Predicated region
      $region101: #{ddg_predictor_forward.1} parent=5 // pred_check
        %p1247 = pneg %p1246
      $region102: #{ddg_predictor_forward.1} parent=5 // pred_check_branch
        %1249 = sbr.rel (%p1247) target = $region104
      $region103: #{ddg_predictor_forward.1} parent=5 // pred_region
        %s1250 = ssub.s32 %s14, 2
        // Predicated region
        $region105: #{ddg_predictor_forward.1} parent=103 // pred_check
          %p1251 = pneg %p195
        $region106: #{ddg_predictor_forward.1} parent=103 // pred_check_branch
          %1253 = sbr.rel (%p1251) target = $region108
        $region107: #{ddg_predictor_forward.1} parent=103 // pred_region
          %s1254 = sand.u32 %s180, 1
          %s1255 = sand.u32 %s180, 1
          %s1256 = smul.addr %s1255, 128
          %s1257 = scalar_lea.vmem [#allocation3], %s1256
        $region108: #{ddg_predictor_forward.1} parent=103 // pred_fallthru
          _
      $region104: #{ddg_predictor_forward.1} parent=5 // pred_fallthru
        _
    $region6: #{ddg_predictor_forward.1} parent=1 // loop_footer
      %s18 = sadd.s32 1, %s14
    $region7: #{ddg_predictor_forward.1} parent=1 // loop_footer_branch
      %13 = sbr.rel target = $region3
    $region8: #{ddg_predictor_forward.1} parent=1 // loop_exit
      _

</llo_original>
